<compile_context>
chip_gen: v5e
topology: v5e:2x2
jax: 0.10.0
libtpu: 0.0.40
codegen_flags: <defaults>
</compile_context>

<pallas_src>
import functools

import jax
import jax.numpy as jnp
from jax.experimental import pallas as pl
from jax.experimental.pallas import tpu as pltpu


def _rope_kernel(x_ref, cos_ref, sin_ref, o_ref, *, ts, slice_tables,
                 has_head_axis):
    """Rotate-half RoPE on one block.

    x_ref / o_ref : (tb, ts, D)      flattened [B*H, S, D] layout, or
                    (tb, ts, H, D)   native [B, S, H, D] layout.
    cos_ref/sin_ref: resident full (S_pad, D) f32 tables (slice_tables picks
                     the current seq tile with pl.ds), or a streamed (ts, D)
                     f32 block when the tables are too big to stay resident.
    """
    if slice_tables:
        start = pl.program_id(1) * ts          # ts-aligned by construction
        cos = cos_ref[pl.ds(start, ts), :]
        sin = sin_ref[pl.ds(start, ts), :]
    else:
        cos = cos_ref[...]
        sin = sin_ref[...]

    if has_head_axis:                          # broadcast over batch and heads
        cos = cos[None, :, None, :]
        sin = sin[None, :, None, :]
    else:                                      # broadcast over (batch*heads)
        cos = cos[None, :, :]
        sin = sin[None, :, :]

    x = x_ref[...].astype(jnp.float32)
    half = x.shape[-1] // 2
    # rotate_half(x) = concat([-x2, x1], -1); exactly the PyTorch formula:
    #   out1 = x1*cos - x2*sin ;  out2 = x2*cos + x1*sin
    x_rot = jnp.concatenate([-x[..., half:], x[..., :half]], axis=-1)
    o_ref[...] = (x * cos + x_rot * sin).astype(o_ref.dtype)


def _tpu_params():
    """Return (num_tensorcores, vmem_limit_bytes) with safe fallbacks."""
    vmem_cap = 64 * 1024 * 1024
    ncores = 1
    try:
        get_info = getattr(pltpu, "get_tpu_info", None)
        if get_info is not None:
            info = get_info()
            cap = getattr(info, "vmem_capacity_bytes", None)
            if cap:
                vmem_cap = int(cap)
            for attr in ("num_tensorcores", "tensorcore_count", "num_cores",
                         "core_count"):
                val = getattr(info, attr, None)
                if isinstance(val, int) and val > 0:
                    ncores = val
                    break
    except Exception:
        pass
    try:
        dev = jax.devices()[0]
        if dev.platform == "tpu" and ncores == 1:
            if "v7" in str(getattr(dev, "device_kind", "")).lower():
                ncores = 2
    except Exception:
        pass
    # 128-MiB-VMEM parts (v5e/v6e) can afford a larger scoped limit than v7x.
    vmem_limit = (64 * 1024 * 1024 if vmem_cap >= 100 * 1024 * 1024
                  else 40 * 1024 * 1024)
    return ncores, vmem_limit


def _choose_tiles(n_rows, S, inner, D, itemsize, ncores, vmem_limit):
    """Pick (tb, ts, tables_resident) so that the double-buffered in/out
    blocks plus the f32 cos/sin tables fit under vmem_limit."""
    sub = 8 * (4 // itemsize)           # sublane multiple for the seq tile
    margin = 2 * 1024 * 1024
    x_row = inner * itemsize            # bytes of x per (row, position)
    table_full = 2 * S * D * 4          # both f32 tables kept resident
    resident = table_full <= vmem_limit // 4

    if resident:
        budget = max(vmem_limit - table_full - margin, 2 * 1024 * 1024)
        per_block = budget // 4         # in + out, double-buffered
        slab = S * x_row
        if slab <= per_block:
            ts = S
            tb = max(1, min(n_rows, per_block // max(slab, 1)))
        else:
            tb = 1
            ts = min(S, max(sub, (per_block // x_row) // sub * sub))
    else:
        # Stream (ts, D) table blocks alongside the x blocks.
        tb = 1
        budget = max(vmem_limit - margin, 4 * 1024 * 1024)
        per_row = 4 * x_row + 16 * D    # x in/out dbuf + 2 tables dbuf
        ts = min(S, max(sub, (budget // per_row) // sub * sub))

    def vmem_use(tb_, ts_):
        grid_s_ = -(-S // ts_)
        tbl = 2 * grid_s_ * ts_ * D * 4 if resident else 16 * ts_ * D
        return tbl + 4 * tb_ * ts_ * x_row

    for _ in range(8):                  # safety net (table padding etc.)
        if vmem_use(tb, ts) + margin <= vmem_limit:
            break
        if tb > 1:
            tb = (tb + 1) // 2
        elif ts > sub and (ts // 2) % sub == 0:
            ts //= 2
        else:
            break

    # Guarantee enough grid steps for multi-TensorCore chips (v7x).
    if ncores > 1:
        target = 2 * ncores
        while (-(-n_rows // tb)) * (-(-S // ts)) < target and tb > 1:
            tb = (tb + 1) // 2
        while ((-(-n_rows // tb)) * (-(-S // ts)) < target
               and ts > sub and ts % 2 == 0 and (ts // 2) % sub == 0):
            ts //= 2
    return tb, ts, resident


@functools.partial(jax.jit, static_argnums=(1,),
                   static_argnames=("theta", "donate"))
def sundial_rope_embedding(x, seq_len, theta=10000.0, donate=False):
    """JAX/Pallas equivalent of SundialRoPEEmbedding.forward(x, seq_len).

    x: [batch, num_heads, seq_len, head_dim] or [batch, seq_len, num_heads,
    head_dim]; same seq-axis rule as the PyTorch module (axis 1 if its size
    matches seq_len, else axis 2).
    """
    if x.ndim != 4:
        raise ValueError(f"Expected 4D tensor, got {x.ndim}D")
    D = x.shape[-1]
    if D % 2 != 0:
        raise ValueError(f"RoPE dimension must be even, got {D}")
    seq_dim = 1 if x.shape[1] == seq_len else 2
    S = x.shape[seq_dim]
    if S > seq_len:
        raise ValueError("sequence axis is longer than seq_len")

    # float32 angle tables (kernel math is f32; exact match for f32 inputs,
    # better-than-PyTorch precision for bf16/f16 inputs at zero extra cost).
    inv_freq = 1.0 / (theta ** (jnp.arange(0, D, 2, dtype=jnp.float32) / D))
    pos = jnp.arange(S, dtype=jnp.float32)
    freqs = pos[:, None] * inv_freq[None, :]                         # [S, D//2]
    cos_full = jnp.concatenate([jnp.cos(freqs), jnp.cos(freqs)], -1)  # [S, D]
    sin_full = jnp.concatenate([jnp.sin(freqs), jnp.sin(freqs)], -1)  # [S, D]

    itemsize = jnp.dtype(x.dtype).itemsize
    ncores, vmem_limit = _tpu_params()

    if seq_dim == 2:                      # [B, H, S, D] -> fold heads on rows
        B, H = x.shape[0], x.shape[1]
        n_rows, inner, has_head_axis = B * H, D, False
        x_op = x.reshape(n_rows, S, D)    # free view
    else:                                 # native [B, S, H, D], no transposes
        B, H = x.shape[0], x.shape[2]
        n_rows, inner, has_head_axis = B, H * D, True
        x_op = x

    tb, ts, resident = _choose_tiles(n_rows, S, inner, D, itemsize, ncores,
                                     vmem_limit)
    grid = (pl.cdiv(n_rows, tb), pl.cdiv(S, ts))
    slice_tables = resident and grid[1] > 1

    if slice_tables:                      # keep in-kernel pl.ds in bounds
        s_pad = grid[1] * ts
        if s_pad > S:
            cos_full = jnp.pad(cos_full, ((0, s_pad - S), (0, 0)))
            sin_full = jnp.pad(sin_full, ((0, s_pad - S), (0, 0)))

    if resident:
        table_spec = pl.BlockSpec(memory_space=pltpu.MemorySpace.VMEM)
    else:
        table_spec = pl.BlockSpec((ts, D), lambda i, j: (j, 0))

    if has_head_axis:
        x_spec = pl.BlockSpec((tb, ts, H, D), lambda i, j: (i, j, 0, 0))
    else:
        x_spec = pl.BlockSpec((tb, ts, D), lambda i, j: (i, j, 0))

    kernel = functools.partial(_rope_kernel, ts=ts, slice_tables=slice_tables,
                               has_head_axis=has_head_axis)

    out = pl.pallas_call(
        kernel,
        out_shape=jax.ShapeDtypeStruct(x_op.shape, x.dtype),
        grid=grid,
        in_specs=[x_spec, table_spec, table_spec],
        out_specs=x_spec,
        compiler_params=pltpu.CompilerParams(
            dimension_semantics=("parallel", "parallel"),
            vmem_limit_bytes=vmem_limit,
        ),
        # Only alias when the caller actually donates its buffer at jit level.
        input_output_aliases={0: 0} if donate else {},
    )(x_op, cos_full, sin_full)

    return out.reshape(x.shape)


def _reference_rope(x, seq_len, theta=10000.0):
    """Pure-JAX reference mirroring the PyTorch forward."""
    D = x.shape[-1]
    inv_freq = 1.0 / (theta ** (jnp.arange(0, D, 2, dtype=jnp.float32) / D))
    seq_idx = jnp.arange(seq_len, dtype=x.dtype)
    freqs = jnp.outer(seq_idx, inv_freq.astype(x.dtype))             # [S, D//2]
    cos = jnp.concatenate([jnp.cos(freqs), jnp.cos(freqs)], -1)       # [S, D]
    sin = jnp.concatenate([jnp.sin(freqs), jnp.sin(freqs)], -1)
    seq_dim = 1 if x.shape[1] == seq_len else 2
    shape = [1, 1, 1, 1]
    shape[seq_dim] = x.shape[seq_dim]
    shape[-1] = D
    cos = cos[: x.shape[seq_dim], :D].reshape(shape)
    sin = sin[: x.shape[seq_dim], :D].reshape(shape)
    x1, x2 = x[..., : D // 2], x[..., D // 2:]
    c1, c2 = cos[..., : D // 2], cos[..., D // 2:]
    s1, s2 = sin[..., : D // 2], sin[..., D // 2:]
    return jnp.concatenate([x1 * c1 - x2 * s1, x1 * s2 + x2 * c2], -1)


if __name__ == "__main__":
    key = jax.random.PRNGKey(0)
    batch, num_heads, seq_len, head_dim = 2, 4, 8, 32

    # Layout A: [B, H, S, D]  (seq axis 2)
    x_bhsd = jax.random.normal(key, (batch, num_heads, seq_len, head_dim),
                               dtype=jnp.float32)
    out = jax.block_until_ready(sundial_rope_embedding(x_bhsd, seq_len))
    ref = _reference_rope(x_bhsd, seq_len)
    assert out.shape == x_bhsd.shape and out.dtype == x_bhsd.dtype
    assert jnp.allclose(out, ref, atol=1e-5, rtol=1e-5), "BHSD mismatch"

    # Layout B: [B, S, H, D]  (seq axis 1) -- handled natively, no transposes.
    x_bshd = jnp.swapaxes(x_bhsd, 1, 2)
    out2 = jax.block_until_ready(sundial_rope_embedding(x_bshd, seq_len))
    ref2 = _reference_rope(x_bshd, seq_len)
    assert out2.shape == x_bshd.shape and out2.dtype == x_bshd.dtype
    assert jnp.allclose(out2, ref2, atol=1e-5, rtol=1e-5), "BSHD mismatch"

    print("KERNEL_OK")
</pallas_src>

<mosaic_0001>
module attributes {stable_mosaic.version = 11 : i64} {
  func.func @_rope_kernel(%arg0: i32, %arg1: i32, %arg2: memref<8x8x32xf32, #tpu.memory_space<vmem>>, %arg3: memref<8x32xf32, #tpu.memory_space<vmem>>, %arg4: memref<8x32xf32, #tpu.memory_space<vmem>>, %arg5: memref<8x8x32xf32, #tpu.memory_space<vmem>>) attributes {dimension_semantics = [#tpu.dimension_semantics<parallel>, #tpu.dimension_semantics<parallel>], iteration_bounds = array<i64: 1, 1>, scalar_prefetch = 0 : i64, scratch_operands = 0 : i64, tpu.core_type = #tpu.core_type<tc>, window_params = [{transform_indices = @transform_0, window_bounds = array<i64: 8, 8, 32>}, {pipeline_mode = #tpu.pipeline_mode<synchronous>, transform_indices = @transform_1, window_bounds = array<i64: 8, 32>}, {pipeline_mode = #tpu.pipeline_mode<synchronous>, transform_indices = @transform_2, window_bounds = array<i64: 8, 32>}, {transform_indices = @transform_3, window_bounds = array<i64: 8, 8, 32>}]} {
    %c0 = arith.constant 0 : index
    %c0_0 = arith.constant 0 : index
    %0 = vector.load %arg3[%c0, %c0_0] : memref<8x32xf32, #tpu.memory_space<vmem>>, vector<8x32xf32>
    %c0_1 = arith.constant 0 : index
    %c0_2 = arith.constant 0 : index
    %1 = vector.load %arg4[%c0_1, %c0_2] : memref<8x32xf32, #tpu.memory_space<vmem>>, vector<8x32xf32>
    %2 = vector.shape_cast %0 : vector<8x32xf32> to vector<1x8x32xf32>
    %3 = vector.shape_cast %1 : vector<8x32xf32> to vector<1x8x32xf32>
    %c0_3 = arith.constant 0 : index
    %c0_4 = arith.constant 0 : index
    %c0_5 = arith.constant 0 : index
    %4 = vector.load %arg2[%c0_3, %c0_4, %c0_5] : memref<8x8x32xf32, #tpu.memory_space<vmem>>, vector<8x8x32xf32>
    %5 = vector.extract_strided_slice %4 {offsets = [0, 0, 16], sizes = [8, 8, 16], strides = [1, 1, 1]} : vector<8x8x32xf32> to vector<8x8x16xf32>
    %cst = arith.constant 0.000000e+00 : f32
    %6 = vector.broadcast %cst : f32 to vector<8x8x16xf32>
    %7 = arith.subf %6, %5 : vector<8x8x16xf32>
    %8 = vector.extract_strided_slice %4 {offsets = [0, 0, 0], sizes = [8, 8, 16], strides = [1, 1, 1]} : vector<8x8x32xf32> to vector<8x8x16xf32>
    %9 = tpu.concatenate %7, %8 in 2 : vector<8x8x16xf32>, vector<8x8x16xf32> -> vector<8x8x32xf32>
    %10 = vector.broadcast %2 : vector<1x8x32xf32> to vector<8x8x32xf32>
    %11 = arith.mulf %4, %10 : vector<8x8x32xf32>
    %12 = vector.broadcast %3 : vector<1x8x32xf32> to vector<8x8x32xf32>
    %13 = arith.mulf %9, %12 : vector<8x8x32xf32>
    %14 = arith.addf %11, %13 : vector<8x8x32xf32>
    %c0_6 = arith.constant 0 : index
    %c0_7 = arith.constant 0 : index
    %c0_8 = arith.constant 0 : index
    %15 = vector.load %arg5[%c0_6, %c0_7, %c0_8] : memref<8x8x32xf32, #tpu.memory_space<vmem>>, vector<8x8x32xf32>
    tpu.vector_store %arg5[%c0_6, %c0_7, %c0_8], %14 {strides = array<i32>} : memref<8x8x32xf32, #tpu.memory_space<vmem>>, vector<8x8x32xf32>,
    return
  }
  func.func @transform_0(%arg0: i32, %arg1: i32) -> (i32, i32, i32) {
    %c0_i32 = arith.constant 0 : i32
    %c0_i32_0 = arith.constant 0 : i32
    return %arg0, %arg1, %c0_i32 : i32, i32, i32
  }
  func.func @transform_1(%arg0: i32, %arg1: i32) -> (i32, i32) {
    %c0_i32 = arith.constant 0 : i32
    %c0_i32_0 = arith.constant 0 : i32
    %c0_i32_1 = arith.constant 0 : i32
    return %c0_i32, %c0_i32_0 : i32, i32
  }
  func.func @transform_2(%arg0: i32, %arg1: i32) -> (i32, i32) {
    %c0_i32 = arith.constant 0 : i32
    %c0_i32_0 = arith.constant 0 : i32
    %c0_i32_1 = arith.constant 0 : i32
    return %c0_i32, %c0_i32_0 : i32, i32
  }
  func.func @transform_3(%arg0: i32, %arg1: i32) -> (i32, i32, i32) {
    %c0_i32 = arith.constant 0 : i32
    %c0_i32_0 = arith.constant 0 : i32
    return %arg0, %arg1, %c0_i32 : i32, i32, i32
  }
}

</mosaic_0001>

<llo_original>
// kernel: sundial_rope_embedding.1
$region0: #{sundial_rope_embedding.1}
  #allocation0 [shape = 'u32[]', space=smem, size = 0x4, offset = 0x4, fixed_abs, tag = 'smem constant byte address 0x4 - core index']
  #allocation1 [shape = 'u32[72,128]{1,0:T(1,128)}', space=vmem, size = 0x9000, scoped, tag = 'internal scratch']
  %s0 = inlined_call_operand.hbm [shape: f32[8,8,32], index: 0, kind: input, shape index: {}]
  %s1 = inlined_call_operand.vmem [shape: f32[8,32], index: 1, kind: input, shape index: {}]
  %s2 = inlined_call_operand.vmem [shape: f32[8,32], index: 2, kind: input, shape index: {}]
  %s3 = inlined_call_operand.hbm [shape: f32[8,8,32], index: 3, kind: output, shape index: {}]
  %s4 = sld [smem:[#allocation0]]
  $region26: #{sundial_rope_embedding.1} parent=0
    _
  %s6 = ssub.s32 1, %s4
  %s7 = scalar_select 0, %s6, %s4
  $region1: #{sundial_rope_embedding.1} parent=0
    #allocation2 [shape = 'u8[32768]{0}', space=vmem, size = 0x8000, scoped, tag = 'input window, operand 0, single buffered']
    #allocation3 [shape = 's32[1]{0}', space=sflag, size = 0x4, scoped, tag = 'scoped memory for sundial_rope_embedding.1']
    #allocation4 [shape = 's32[1]{0}', space=sflag, size = 0x4, scoped, tag = 'scoped memory for sundial_rope_embedding.1']
    #allocation5 [shape = 'u8[32768]{0}', space=vmem, size = 0x8000, scoped, tag = 'output window, operand 0, single buffered']
    %8 = vsyncpa [#allocation3], 0
    %9 = vsyncpa [#allocation4], 0
    // Predicated region
    $region2: #{sundial_rope_embedding.1} parent=1 // pred_check
      _
    $region3: #{sundial_rope_embedding.1} parent=1 // pred_check_branch
      %11 = sbr.rel (0) target = $region5
    $region4: #{sundial_rope_embedding.1} parent=1 // pred_region
      %13 = vsyncadd [#allocation3], 0
      %s14 = sshll.u32 %s0, 4
      %s15 = int_to_ptr.hbm [resolvable:$true] %s14
      %s16 = sshll.u32 [#allocation2], 4
      %s17 = int_to_ptr.vmem [resolvable:$true] %s16
      %22 = dma.hbm_to_vmem [thread:$0]  %s15, 1024, %s17, [#allocation3], 128, 128, 8
    $region5: #{sundial_rope_embedding.1} parent=1 // pred_fallthru
      _
    // Predicated region
    $region6: #{sundial_rope_embedding.1} parent=1 // pred_check
      _
    $region7: #{sundial_rope_embedding.1} parent=1 // pred_check_branch
      %24 = sbr.rel (0) target = $region9
    $region8: #{sundial_rope_embedding.1} parent=1 // pred_region
      _
    $region9: #{sundial_rope_embedding.1} parent=1 // pred_fallthru
      _
    // Predicated region
    $region10: #{sundial_rope_embedding.1} parent=1 // pred_check
      _
    $region11: #{sundial_rope_embedding.1} parent=1 // pred_check_branch
      %26 = sbr.rel (0) target = $region13
    $region12: #{sundial_rope_embedding.1} parent=1 // pred_region
      _
    $region13: #{sundial_rope_embedding.1} parent=1 // pred_fallthru
      _
    // Predicated region
    $region14: #{sundial_rope_embedding.1} parent=1 // pred_check
      _
    $region15: #{sundial_rope_embedding.1} parent=1 // pred_check_branch
      %28 = sbr.rel (0) target = $region17
    $region16: #{sundial_rope_embedding.1} parent=1 // pred_region
      %30 = dma.done [#allocation3], 1024
    $region17: #{sundial_rope_embedding.1} parent=1 // pred_fallthru
      _
    %v31 = vld [vmem:[%s1] sm:$0xff]
    %v32 = vld [vmem:[%s2] sm:$0xff]
    %v33 = vld [vmem:[#allocation2] sm:$0xff]
    %v34 = vld [vmem:[#allocation2 + $0x8] sm:$0xff]
    %v35 = vld [vmem:[#allocation2 + $0x10] sm:$0xff]
    %v36 = vld [vmem:[#allocation2 + $0x18] sm:$0xff]
    %v37 = vld [vmem:[#allocation2 + $0x20] sm:$0xff]
    %v38 = vld [vmem:[#allocation2 + $0x28] sm:$0xff]
    %v39 = vld [vmem:[#allocation2 + $0x30] sm:$0xff]
    %v40 = vld [vmem:[#allocation2 + $0x38] sm:$0xff]
    %v41 = vsub.f32 0.0, %v33
    %v42 = vsub.f32 0.0, %v34
    %v43 = vsub.f32 0.0, %v35
    %v44 = vsub.f32 0.0, %v36
    %v45 = vsub.f32 0.0, %v37
    %v46 = vsub.f32 0.0, %v38
    %v47 = vsub.f32 0.0, %v39
    %v48 = vsub.f32 0.0, %v40
    %57 = vrot.lane.b32.xlu0 %v41, 112
    %v58 = vpop.permute.xlu0 %57
    %59 = vrot.lane.b32.xlu0 %v42, 112
    %v60 = vpop.permute.xlu0 %59
    %61 = vrot.lane.b32.xlu0 %v43, 112
    %v62 = vpop.permute.xlu0 %61
    %63 = vrot.lane.b32.xlu0 %v44, 112
    %v64 = vpop.permute.xlu0 %63
    %65 = vrot.lane.b32.xlu0 %v45, 112
    %v66 = vpop.permute.xlu0 %65
    %67 = vrot.lane.b32.xlu0 %v46, 112
    %v68 = vpop.permute.xlu0 %67
    %69 = vrot.lane.b32.xlu0 %v47, 112
    %v70 = vpop.permute.xlu0 %69
    %71 = vrot.lane.b32.xlu0 %v48, 112
    %v72 = vpop.permute.xlu0 %71
    %89 = vrot.lane.b32.xlu0 %v33, 16
    %v90 = vpop.permute.xlu0 %89
    %91 = vrot.lane.b32.xlu0 %v34, 16
    %v92 = vpop.permute.xlu0 %91
    %93 = vrot.lane.b32.xlu0 %v35, 16
    %v94 = vpop.permute.xlu0 %93
    %95 = vrot.lane.b32.xlu0 %v36, 16
    %v96 = vpop.permute.xlu0 %95
    %97 = vrot.lane.b32.xlu0 %v37, 16
    %v98 = vpop.permute.xlu0 %97
    %99 = vrot.lane.b32.xlu0 %v38, 16
    %v100 = vpop.permute.xlu0 %99
    %101 = vrot.lane.b32.xlu0 %v39, 16
    %v102 = vpop.permute.xlu0 %101
    %103 = vrot.lane.b32.xlu0 %v40, 16
    %v104 = vpop.permute.xlu0 %103
    %vm113 = vcmask 130048
    %v114 = vsel %vm113, %v58, %v90
    %v115 = vsel %vm113, %v60, %v92
    %v116 = vsel %vm113, %v62, %v94
    %v117 = vsel %vm113, %v64, %v96
    %v118 = vsel %vm113, %v66, %v98
    %v119 = vsel %vm113, %v68, %v100
    %v120 = vsel %vm113, %v70, %v102
    %v121 = vsel %vm113, %v72, %v104
    %v122 = vmul.f32 %v33, %v31
    %v123 = vmul.f32 %v34, %v31
    %v124 = vmul.f32 %v35, %v31
    %v125 = vmul.f32 %v36, %v31
    %v126 = vmul.f32 %v37, %v31
    %v127 = vmul.f32 %v38, %v31
    %v128 = vmul.f32 %v39, %v31
    %v129 = vmul.f32 %v40, %v31
    %v130 = vmul.f32 %v114, %v32
    %v131 = vmul.f32 %v115, %v32
    %v132 = vmul.f32 %v116, %v32
    %v133 = vmul.f32 %v117, %v32
    %v134 = vmul.f32 %v118, %v32
    %v135 = vmul.f32 %v119, %v32
    %v136 = vmul.f32 %v120, %v32
    %v137 = vmul.f32 %v121, %v32
    %v138 = vadd.f32 %v122, %v130
    %v139 = vadd.f32 %v123, %v131
    %v140 = vadd.f32 %v124, %v132
    %v141 = vadd.f32 %v125, %v133
    %v142 = vadd.f32 %v126, %v134
    %v143 = vadd.f32 %v127, %v135
    %v144 = vadd.f32 %v128, %v136
    %v145 = vadd.f32 %v129, %v137
    %vm146 = vcmask 261120
    %147 = vst.msk [vmem:[#allocation5] sm:$0xff] %vm146, %v138
    %148 = vst.msk [vmem:[#allocation5 + $0x8] sm:$0xff] %vm146, %v139
    %149 = vst.msk [vmem:[#allocation5 + $0x10] sm:$0xff] %vm146, %v140
    %150 = vst.msk [vmem:[#allocation5 + $0x18] sm:$0xff] %vm146, %v141
    %151 = vst.msk [vmem:[#allocation5 + $0x20] sm:$0xff] %vm146, %v142
    %152 = vst.msk [vmem:[#allocation5 + $0x28] sm:$0xff] %vm146, %v143
    %153 = vst.msk [vmem:[#allocation5 + $0x30] sm:$0xff] %vm146, %v144
    %154 = vst.msk [vmem:[#allocation5 + $0x38] sm:$0xff] %vm146, %v145
    // Predicated region
    $region18: #{sundial_rope_embedding.1} parent=1 // pred_check
      _
    $region19: #{sundial_rope_embedding.1} parent=1 // pred_check_branch
      %156 = sbr.rel (0) target = $region21
    $region20: #{sundial_rope_embedding.1} parent=1 // pred_region
      %158 = vsyncadd [#allocation4], 0
      %s159 = sshll.u32 [#allocation5], 4
      %s160 = int_to_ptr.vmem [resolvable:$true] %s159
      %s161 = sshll.u32 %s3, 4
      %s162 = int_to_ptr.hbm [resolvable:$true] %s161
      %167 = dma.vmem_to_hbm [thread:$0]  %s160, 1024, %s162, [#allocation4], 128, 128, 8
    $region21: #{sundial_rope_embedding.1} parent=1 // pred_fallthru
      _
    // Predicated region
    $region22: #{sundial_rope_embedding.1} parent=1 // pred_check
      _
    $region23: #{sundial_rope_embedding.1} parent=1 // pred_check_branch
      %169 = sbr.rel (0) target = $region25
    $region24: #{sundial_rope_embedding.1} parent=1 // pred_region
      %171 = dma.done [#allocation4], 1024
    $region25: #{sundial_rope_embedding.1} parent=1 // pred_fallthru
      _
    %172 = vsyncpa [#allocation3], 1
    %173 = vsyncpa [#allocation4], 1

</llo_original>
